<compile_context>
chip_gen: v7x
topology: tpu7x:2x2x1
jax: 0.10.0
libtpu: 0.0.40
codegen_flags: <defaults>
</compile_context>

<pallas_src>
import functools

import jax
import jax.numpy as jnp
import numpy as np
from jax.experimental import pallas as pl
from jax.experimental.pallas import tpu as pltpu


def _index_put_1d_kernel(n_true, x_ref, iv_ref, out_ref):
    # x_ref:   f32[1, NP]  original input, lane-padded to a multiple of 128
    # iv_ref:  f32[NI, 2]  column 0 = int32 index bits, column 1 = value
    # out_ref: f32[1, NP]  result (aliased onto x's padded slab)
    n_pad = x_ref.shape[1]
    ni = iv_ref.shape[0]

    iv_i32 = pltpu.bitcast(iv_ref[...], jnp.int32)        # reinterpret, no data movement
    idx = iv_i32[:, 0:1]                                   # [NI, 1] scatter indices
    val = iv_ref[...][:, 1:2]                              # [NI, 1] scatter values
    # PyTorch negative-index wrap uses the *logical* length, so padding lanes
    # (pos >= n_true) can never be hit.
    idx = jnp.where(idx < 0, idx + n_true, idx)
    # TODO(synk): PyTorch raises for idx < -N or idx >= N; such indices are silently ignored here.

    pos = jax.lax.broadcasted_iota(jnp.int32, (ni, n_pad), 1)    # position id per lane
    order = jax.lax.broadcasted_iota(jnp.int32, (ni, n_pad), 0)  # write order per index

    hit = pos == idx                                       # [NI, NP] which index hits which slot
    # last write wins: largest i that hits each position (-1 = untouched)
    last = jnp.max(jnp.where(hit, order, -1), axis=0, keepdims=True)     # [1, NP]
    # order == last already implies hit (and never matches the -1 sentinel),
    # so no extra AND with `hit` is needed — at most one True per column.
    winner = order == last
    scattered = jnp.sum(
        jnp.where(winner, val, jnp.zeros((), x_ref.dtype)),
        axis=0, keepdims=True)                             # [1, NP]

    out_ref[...] = jnp.where(last >= 0, scattered, x_ref[...])


def _index_put_1d(input_arr, index, value):
    (n,) = input_arr.shape
    (ni,) = index.shape
    n_pad = ((n + 127) // 128) * 128                       # lane-dense output slab

    x2 = jnp.pad(input_arr, (0, n_pad - n)).reshape(1, n_pad)

    # Pack (index, value) into one [NI, 2] f32 array: one DMA instead of two.
    idx_bits = jax.lax.bitcast_convert_type(index.astype(jnp.int32), jnp.float32)
    iv = jnp.stack([idx_bits, value.astype(input_arr.dtype)], axis=1)    # [NI, 2]

    vmem = pl.BlockSpec(memory_space=pltpu.MemorySpace.VMEM)
    out = pl.pallas_call(
        functools.partial(_index_put_1d_kernel, n),
        out_shape=jax.ShapeDtypeStruct((1, n_pad), input_arr.dtype),
        in_specs=[vmem, vmem],
        out_specs=vmem,
        input_output_aliases={0: 0},                       # clone-then-overwrite: reuse x's slab
    )(x2, iv)
    return out[0, :n]


index_put_1d = jax.jit(_index_put_1d)


if __name__ == "__main__":
    key = jax.random.PRNGKey(0)
    k1, k2 = jax.random.split(key)

    N, NI = 100, 32                      # 1-D float input, 1-D indices/values
    x = jax.random.normal(k1, (N,), dtype=jnp.float32)
    v = jax.random.normal(k2, (NI,), dtype=jnp.float32)

    # deterministic indices including duplicates (last write wins) and a
    # negative index (PyTorch wraps it to N-3)
    idx_np = (np.arange(NI) * 7 % N).astype(np.int64)
    idx_np[5] = idx_np[11]
    idx_np[7] = -3
    idx = jnp.asarray(idx_np)            # canonicalized to int32 under default x32

    # reference computed with an explicit loop to match PyTorch's
    # non-accumulate "last write wins" semantics exactly
    ref = np.asarray(x).copy()
    v_np = np.asarray(v)
    for i in range(NI):
        ref[int(idx_np[i]) % N] = v_np[i]

    out = index_put_1d(x, idx, v)
    out = jax.block_until_ready(out)

    np.testing.assert_allclose(np.asarray(out), ref, rtol=0, atol=0)
    print("KERNEL_OK")
</pallas_src>

<mosaic_0001>
module attributes {stable_mosaic.version = 11 : i64} {
  func.func @_index_put_1d_kernel(%arg0: memref<1x128xf32, #tpu.memory_space<vmem>>, %arg1: memref<32x2xf32, #tpu.memory_space<vmem>>, %arg2: memref<1x128xf32, #tpu.memory_space<vmem>>) attributes {dimension_semantics = [], scalar_prefetch = 0 : i64, scratch_operands = 0 : i64, tpu.core_type = #tpu.core_type<tc>} {
    %c0 = arith.constant 0 : index
    %c0_0 = arith.constant 0 : index
    %0 = vector.load %arg1[%c0, %c0_0] : memref<32x2xf32, #tpu.memory_space<vmem>>, vector<32x2xf32>
    %1 = tpu.bitcast %0 : vector<32x2xf32> -> vector<32x2xi32>
    %2 = vector.extract_strided_slice %1 {offsets = [0, 0], sizes = [32, 1], strides = [1, 1]} : vector<32x2xi32> to vector<32x1xi32>
    %c0_1 = arith.constant 0 : index
    %c0_2 = arith.constant 0 : index
    %3 = vector.load %arg1[%c0_1, %c0_2] : memref<32x2xf32, #tpu.memory_space<vmem>>, vector<32x2xf32>
    %4 = vector.extract_strided_slice %3 {offsets = [0, 1], sizes = [32, 1], strides = [1, 1]} : vector<32x2xf32> to vector<32x1xf32>
    %c0_i32 = arith.constant 0 : i32
    %5 = vector.broadcast %c0_i32 : i32 to vector<32x1xi32>
    %6 = arith.cmpi slt, %2, %5 : vector<32x1xi32>
    %c100_i32 = arith.constant 100 : i32
    %7 = vector.broadcast %c100_i32 : i32 to vector<32x1xi32>
    %8 = arith.addi %2, %7 : vector<32x1xi32>
    %9 = arith.select %6, %8, %2 : vector<32x1xi1>, vector<32x1xi32>
    %10 = tpu.iota {dimensions = array<i32: 1>} : vector<32x128xi32>
    %11 = tpu.iota {dimensions = array<i32: 0>} : vector<32x128xi32>
    %12 = vector.broadcast %9 : vector<32x1xi32> to vector<32x128xi32>
    %13 = arith.cmpi eq, %10, %12 : vector<32x128xi32>
    %c-1_i32 = arith.constant -1 : i32
    %14 = vector.broadcast %c-1_i32 : i32 to vector<32x128xi32>
    %15 = arith.select %13, %11, %14 : vector<32x128xi1>, vector<32x128xi32>
    %cst = arith.constant dense<-2147483648> : vector<128xi32>
    %16 = vector.multi_reduction <maxsi>, %15, %cst [0] : vector<32x128xi32> to vector<128xi32>
    %17 = vector.shape_cast %16 : vector<128xi32> to vector<1x128xi32>
    %18 = vector.broadcast %17 : vector<1x128xi32> to vector<32x128xi32>
    %19 = arith.cmpi eq, %11, %18 : vector<32x128xi32>
    %cst_3 = arith.constant 0.000000e+00 : f32
    %20 = vector.shape_cast %4 : vector<32x1xf32> to vector<32x1xf32>
    %21 = vector.broadcast %20 : vector<32x1xf32> to vector<32x128xf32>
    %22 = vector.broadcast %cst_3 : f32 to vector<32x128xf32>
    %23 = arith.select %19, %21, %22 : vector<32x128xi1>, vector<32x128xf32>
    %cst_4 = arith.constant dense<0.000000e+00> : vector<128xf32>
    %24 = vector.multi_reduction <add>, %23, %cst_4 [0] : vector<32x128xf32> to vector<128xf32>
    %25 = vector.shape_cast %24 : vector<128xf32> to vector<1x128xf32>
    %c0_i32_5 = arith.constant 0 : i32
    %26 = vector.broadcast %c0_i32_5 : i32 to vector<1x128xi32>
    %27 = arith.cmpi sge, %17, %26 : vector<1x128xi32>
    %c0_6 = arith.constant 0 : index
    %c0_7 = arith.constant 0 : index
    %28 = vector.load %arg0[%c0_6, %c0_7] : memref<1x128xf32, #tpu.memory_space<vmem>>, vector<1x128xf32>
    %29 = arith.select %27, %25, %28 : vector<1x128xi1>, vector<1x128xf32>
    %c0_8 = arith.constant 0 : index
    %c0_9 = arith.constant 0 : index
    %30 = vector.load %arg2[%c0_8, %c0_9] : memref<1x128xf32, #tpu.memory_space<vmem>>, vector<1x128xf32>
    tpu.vector_store %arg2[%c0_8, %c0_9], %29 {strides = array<i32>} : memref<1x128xf32, #tpu.memory_space<vmem>>, vector<1x128xf32>,
    return
  }
}

</mosaic_0001>

<llo_original>
// kernel: _index_put_1d.1
$region0: #{_index_put_1d.1}
  #allocation0 [shape = 'u32[]', space=smem, size = 0x4, offset = 0x4, fixed_abs, tag = 'smem constant byte address 0x4 - core index']
  #allocation1 [shape = 'u32[144,128]{1,0:T(1,128)}', space=vmem, size = 0x12000, scoped, tag = 'internal scratch']
  %s0 = inlined_call_operand.vmem [shape: f32[1,128], index: 0, kind: input, shape index: {}, may-alias: {0,2}]
  %s1 = inlined_call_operand.vmem [shape: f32[32,2], index: 1, kind: input, shape index: {}]
  %s2 = inlined_call_operand.vmem [shape: f32[1,128], index: 2, kind: output, shape index: {}, may-alias: {0,2}]
  %s3 = sld [smem:[#allocation0]]
  $region18: #{_index_put_1d.1} parent=0
    _
  %s5 = ssub.s32 1, %s3
  %s6 = scalar_select 0, %s5, %s3
  // Predicated region
  $region2: #{_index_put_1d.1} parent=0 // pred_check
    _
  $region3: #{_index_put_1d.1} parent=0 // pred_check_branch
    %8 = sbr.rel (0) target = $region5
  $region4: #{_index_put_1d.1} parent=0 // pred_region
    _
  $region5: #{_index_put_1d.1} parent=0 // pred_fallthru
    _
  // Predicated region
  $region6: #{_index_put_1d.1} parent=0 // pred_check
    _
  $region7: #{_index_put_1d.1} parent=0 // pred_check_branch
    %10 = sbr.rel (0) target = $region9
  $region8: #{_index_put_1d.1} parent=0 // pred_region
    _
  $region9: #{_index_put_1d.1} parent=0 // pred_fallthru
    _
  %v11 = vld [vmem:[%s1] sm:$0xff]
  %v12 = vld [vmem:[%s1 + $0x8] sm:$0xff]
  %v13 = vld [vmem:[%s1 + $0x10] sm:$0xff]
  %v14 = vld [vmem:[%s1 + $0x18] sm:$0xff]
  %vm19 = vcmp.lt.s32.totalorder %v11, 0
  %vm20 = vcmp.lt.s32.totalorder %v12, 0
  %vm21 = vcmp.lt.s32.totalorder %v13, 0
  %vm22 = vcmp.lt.s32.totalorder %v14, 0
  %v23 = vadd.s32 %v11, 100
  %v24 = vadd.s32 %v12, 100
  %v25 = vadd.s32 %v13, 100
  %v26 = vadd.s32 %v14, 100
  %v27 = vsel %vm19, %v23, %v11
  %v28 = vsel %vm20, %v24, %v12
  %v29 = vsel %vm21, %v25, %v13
  %v30 = vsel %vm22, %v26, %v14
  %v31 = vlaneseq
  %v32 = vand.u32 %v31, 127
  %v33 = vlaneseq
  %v34 = vshrl.u32 %v33, 7
  %v35 = vadd.s32 %v34, 8
  %v36 = vadd.s32 %v34, 16
  %v37 = vadd.s32 %v34, 24
  %38 = vset.pattern.permute.xlu0 0
  %39 = vperm.xlu0 %38, %v27
  %v40 = vpop.permute.xlu0 %39
  %41 = vset.pattern.permute.xlu0 0
  %42 = vperm.xlu0 %41, %v28
  %v43 = vpop.permute.xlu0 %42
  %44 = vset.pattern.permute.xlu0 0
  %45 = vperm.xlu0 %44, %v29
  %v46 = vpop.permute.xlu0 %45
  %47 = vset.pattern.permute.xlu0 0
  %48 = vperm.xlu0 %47, %v30
  %v49 = vpop.permute.xlu0 %48
  %vm50 = vcmp.eq.s32.totalorder %v32, %v40
  %vm51 = vcmp.eq.s32.totalorder %v32, %v43
  %vm52 = vcmp.eq.s32.totalorder %v32, %v46
  %vm53 = vcmp.eq.s32.totalorder %v32, %v49
  %v54 = vsel %vm50, %v34, 4294967295
  %v55 = vsel %vm51, %v35, 4294967295
  %v56 = vsel %vm52, %v36, 4294967295
  %v57 = vsel %vm53, %v37, 4294967295
  %vm58 = vcmp.gt.s32.totalorder %v54, %v55
  %v59 = vsel %vm58, %v54, %v55
  %vm60 = vcmp.gt.s32.totalorder %v56, %v57
  %v61 = vsel %vm60, %v56, %v57
  %vm62 = vcmp.gt.s32.totalorder %v59, %v61
  %v63 = vsel %vm62, %v59, %v61
  %v64 = vrot.slane %v63, 4
  %vm65 = vcmp.gt.s32.totalorder %v63, %v64
  %v66 = vsel %vm65, %v63, %v64
  %v67 = vrot.slane %v66, 2
  %vm68 = vcmp.gt.s32.totalorder %v66, %v67
  %v69 = vsel %vm68, %v66, %v67
  %v70 = vrot.slane %v69, 1
  %vm71 = vcmp.gt.s32.totalorder %v69, %v70
  %v72 = vsel %vm71, %v69, %v70
  %vm73 = vcmp.eq.s32.totalorder %v34, %v72
  %vm74 = vcmp.eq.s32.totalorder %v35, %v72
  %vm75 = vcmp.eq.s32.totalorder %v36, %v72
  %vm76 = vcmp.eq.s32.totalorder %v37, %v72
  %77 = vset.pattern.permute.xlu0 1
  %78 = vperm.xlu0 %77, %v11
  %v79 = vpop.permute.xlu0 %78
  %81 = vset.pattern.permute.xlu0 1
  %82 = vperm.xlu0 %81, %v12
  %v83 = vpop.permute.xlu0 %82
  %85 = vset.pattern.permute.xlu0 1
  %86 = vperm.xlu0 %85, %v13
  %v87 = vpop.permute.xlu0 %86
  %89 = vset.pattern.permute.xlu0 1
  %90 = vperm.xlu0 %89, %v14
  %v91 = vpop.permute.xlu0 %90
  %v93 = vsel %vm73, %v79, 0.0
  %v94 = vsel %vm74, %v83, 0.0
  %v95 = vsel %vm75, %v87, 0.0
  %v96 = vsel %vm76, %v91, 0.0
  %v97 = vadd.f32 %v93, %v94
  %v98 = vadd.f32 %v97, %v95
  %v99 = vadd.f32 %v98, %v96
  %v100 = vrot.slane %v99, 4
  %v101 = vadd.f32 %v99, %v100
  %v102 = vrot.slane %v101, 2
  %v103 = vadd.f32 %v101, %v102
  %v104 = vrot.slane %v103, 1
  %v105 = vadd.f32 %v103, %v104
  %vm106 = vcmp.ge.s32.totalorder %v72, 0
  %v107 = vld [vmem:[%s0] sm:$0x1]
  %v108 = vsel %vm106, %v105, %v107
  %109 = vst [vmem:[%s2] sm:$0x1] %v108
  // Predicated region
  $region10: #{_index_put_1d.1} parent=0 // pred_check
    _
  $region11: #{_index_put_1d.1} parent=0 // pred_check_branch
    %111 = sbr.rel (0) target = $region13
  $region12: #{_index_put_1d.1} parent=0 // pred_region
    _
  $region13: #{_index_put_1d.1} parent=0 // pred_fallthru
    _
  // Predicated region
  $region14: #{_index_put_1d.1} parent=0 // pred_check
    _
  $region15: #{_index_put_1d.1} parent=0 // pred_check_branch
    %113 = sbr.rel (0) target = $region17
  $region16: #{_index_put_1d.1} parent=0 // pred_region
    _
  $region17: #{_index_put_1d.1} parent=0 // pred_fallthru
    _

</llo_original>
